<compile_context>
chip_gen: v6e
topology: v6e:2x2x1
jax: 0.10.0
libtpu: 0.0.40
codegen_flags: <defaults>
</compile_context>

<pallas_src>
import jax
import jax.numpy as jnp
from jax.experimental import pallas as pl
from jax.experimental.pallas import tpu as pltpu

_LN_EPS = 1e-5  # PyTorch nn.LayerNorm default


def _residual_connect_kernel(x_ref, h_ref, wt_ref, b_ref, g_ref, beta_ref, o_ref):
    # x_ref/h_ref/o_ref: (TILE_R, H) tiles.  wt_ref: (H, H) = W^T (whole array).
    # b_ref/g_ref/beta_ref: (1, H) broadcast rows.
    x = x_ref[...]
    # Dense: x @ W^T + b  (W^T already materialized in the wrapper; MXU matmul).
    y = jnp.dot(x, wt_ref[...], preferred_element_type=jnp.float32)
    y = y + b_ref[...].astype(jnp.float32)
    # TODO(synk): Dropout(p=0.2) is identity in the inference forward pass; no RNG here.
    z = y + h_ref[...].astype(jnp.float32)
    # LayerNorm over the hidden (lane) axis.
    mean = jnp.mean(z, axis=-1, keepdims=True)
    zc = z - mean
    var = jnp.mean(zc * zc, axis=-1, keepdims=True)
    inv = jax.lax.rsqrt(var + _LN_EPS)
    out = zc * inv * g_ref[...].astype(jnp.float32) + beta_ref[...].astype(jnp.float32)
    o_ref[...] = out.astype(o_ref.dtype)


def _pick_row_tile(rows: int) -> int:
    # Largest tile (multiple of 8 sublanes for f32) that divides the row count;
    # caps per-step VMEM footprint well under the scoped limits of
    # v5e (16 MiB default) / v6e (32 MiB) / v7x (32 of 64 MiB).
    for cand in (1024, 512, 256, 128, 64, 32, 16, 8):
        if rows % cand == 0:
            return cand
    return rows  # fall back to one full-row block (block == array dims)


def residual_connect(last_node_output, hidden_state, w, b, gamma, beta):
    """Fused dense + residual add + LayerNorm matching ResidualConnect.forward.

    last_node_output: (B, S, H)      hidden_state: (B, H, S)
    w: (H, H) torch Linear weight (out_features, in_features)
    b, gamma, beta: (H,)
    Returns (B, H, S).
    """
    bsz, seq, hid = last_node_output.shape
    rows = bsz * seq
    tile_r = _pick_row_tile(rows)
    n_tiles = rows // tile_r

    x2d = last_node_output.reshape(rows, hid)
    h2d = jnp.transpose(hidden_state, (0, 2, 1)).reshape(rows, hid)
    wt = jnp.transpose(w)              # (in, out) so the kernel computes x @ W^T
    b2d = b.reshape(1, hid)
    g2d = gamma.reshape(1, hid)
    beta2d = beta.reshape(1, hid)

    itemsize = jnp.dtype(last_node_output.dtype).itemsize
    cost = pl.CostEstimate(
        flops=2 * rows * hid * hid + 8 * rows * hid,
        transcendentals=rows,
        bytes_accessed=(3 * rows * hid + hid * hid + 3 * hid) * itemsize,
    )

    out2d = pl.pallas_call(
        _residual_connect_kernel,
        out_shape=jax.ShapeDtypeStruct((rows, hid), last_node_output.dtype),
        grid_spec=pltpu.PrefetchScalarGridSpec(
            num_scalar_prefetch=0,
            grid=(n_tiles,),
            in_specs=[
                pl.BlockSpec((tile_r, hid), lambda i: (i, 0)),  # activations tile
                pl.BlockSpec((tile_r, hid), lambda i: (i, 0)),  # residual tile
                pl.BlockSpec((hid, hid), lambda i: (0, 0)),     # W^T (resident)
                pl.BlockSpec((1, hid), lambda i: (0, 0)),       # bias
                pl.BlockSpec((1, hid), lambda i: (0, 0)),       # LN gamma
                pl.BlockSpec((1, hid), lambda i: (0, 0)),       # LN beta
            ],
            out_specs=pl.BlockSpec((tile_r, hid), lambda i: (i, 0)),
        ),
        compiler_params=pltpu.CompilerParams(
            dimension_semantics=("parallel",),  # rows independent -> shards over v7x's 2 TCs
        ),
        cost_estimate=cost,
    )(x2d, h2d, wt, b2d, g2d, beta2d)

    out = out2d.reshape(bsz, seq, hid)
    return jnp.transpose(out, (0, 2, 1))


if __name__ == "__main__":
    key = jax.random.PRNGKey(0)
    k1, k2, k3, k4, k5, k6 = jax.random.split(key, 6)

    # Small shapes consistent with the module: batch=2, seq=16, hidden=256
    # (hidden_size=256 from config; multiple of 128 -> lane-dense).
    B, S, H = 2, 16, 256
    x = jax.random.normal(k1, (B, S, H), dtype=jnp.float32)      # last_node_output
    hs = jax.random.normal(k2, (B, H, S), dtype=jnp.float32)     # hidden_state (B, H, S)
    w = jax.random.normal(k3, (H, H), dtype=jnp.float32) * (1.0 / H ** 0.5)
    b = 0.1 * jax.random.normal(k4, (H,), dtype=jnp.float32)
    gamma = 1.0 + 0.1 * jax.random.normal(k5, (H,), dtype=jnp.float32)
    beta = 0.1 * jax.random.normal(k6, (H,), dtype=jnp.float32)

    out = residual_connect(x, hs, w, b, gamma, beta)
    out = jax.block_until_ready(out)

    # Pure-JAX reference (dropout is identity at inference).
    y = x @ w.T + b
    z = y + jnp.transpose(hs, (0, 2, 1))
    mean = z.mean(-1, keepdims=True)
    var = ((z - mean) ** 2).mean(-1, keepdims=True)
    ref = (z - mean) / jnp.sqrt(var + _LN_EPS) * gamma + beta
    ref = jnp.transpose(ref, (0, 2, 1))

    assert out.shape == (B, H, S)
    assert jnp.allclose(out, ref, atol=1e-4, rtol=1e-4), "mismatch vs reference"

    print("KERNEL_OK")
</pallas_src>

<mosaic_0001>
module attributes {stable_mosaic.version = 11 : i64} {
  func.func @_residual_connect_kernel(%arg0: i32, %arg1: memref<32x256xf32, #tpu.memory_space<vmem>>, %arg2: memref<32x256xf32, #tpu.memory_space<vmem>>, %arg3: memref<256x256xf32, #tpu.memory_space<vmem>>, %arg4: memref<1x256xf32, #tpu.memory_space<vmem>>, %arg5: memref<1x256xf32, #tpu.memory_space<vmem>>, %arg6: memref<1x256xf32, #tpu.memory_space<vmem>>, %arg7: memref<32x256xf32, #tpu.memory_space<vmem>>) attributes {dimension_semantics = [#tpu.dimension_semantics<parallel>], iteration_bounds = array<i64: 1>, scalar_prefetch = 0 : i64, scratch_operands = 0 : i64, tpu.core_type = #tpu.core_type<tc>, window_params = [{transform_indices = @transform_0, window_bounds = array<i64: 32, 256>}, {transform_indices = @transform_1, window_bounds = array<i64: 32, 256>}, {pipeline_mode = #tpu.pipeline_mode<synchronous>, transform_indices = @transform_2, window_bounds = array<i64: 256, 256>}, {pipeline_mode = #tpu.pipeline_mode<synchronous>, transform_indices = @transform_3, window_bounds = array<i64: 1, 256>}, {pipeline_mode = #tpu.pipeline_mode<synchronous>, transform_indices = @transform_4, window_bounds = array<i64: 1, 256>}, {pipeline_mode = #tpu.pipeline_mode<synchronous>, transform_indices = @transform_5, window_bounds = array<i64: 1, 256>}, {transform_indices = @transform_6, window_bounds = array<i64: 32, 256>}]} {
    %c0 = arith.constant 0 : index
    %c0_0 = arith.constant 0 : index
    %0 = vector.load %arg1[%c0, %c0_0] : memref<32x256xf32, #tpu.memory_space<vmem>>, vector<32x256xf32>
    %c0_1 = arith.constant 0 : index
    %c0_2 = arith.constant 0 : index
    %1 = vector.load %arg3[%c0_1, %c0_2] : memref<256x256xf32, #tpu.memory_space<vmem>>, vector<256x256xf32>
    %cst = arith.constant dense<0.000000e+00> : vector<32x256xf32>
    %2 = tpu.matmul %0, %1, %cst {dimension_numbers = #tpu.dot_dimension_numbers<[1], [0], [0], [1], [0, 0, 1, 1], [], []>} : vector<32x256xf32>, vector<256x256xf32>, vector<32x256xf32> -> vector<32x256xf32>
    %c0_3 = arith.constant 0 : index
    %c0_4 = arith.constant 0 : index
    %3 = vector.load %arg4[%c0_3, %c0_4] : memref<1x256xf32, #tpu.memory_space<vmem>>, vector<1x256xf32>
    %4 = vector.broadcast %3 : vector<1x256xf32> to vector<32x256xf32>
    %5 = arith.addf %2, %4 : vector<32x256xf32>
    %c0_5 = arith.constant 0 : index
    %c0_6 = arith.constant 0 : index
    %6 = vector.load %arg2[%c0_5, %c0_6] : memref<32x256xf32, #tpu.memory_space<vmem>>, vector<32x256xf32>
    %7 = arith.addf %5, %6 : vector<32x256xf32>
    %cst_7 = arith.constant dense<0.000000e+00> : vector<32xf32>
    %8 = vector.multi_reduction <add>, %7, %cst_7 [1] : vector<32x256xf32> to vector<32xf32>
    %9 = vector.shape_cast %8 : vector<32xf32> to vector<32x1xf32>
    %cst_8 = arith.constant 2.560000e+02 : f32
    %10 = vector.broadcast %cst_8 : f32 to vector<32x1xf32>
    %11 = arith.divf %9, %10 : vector<32x1xf32>
    %12 = vector.broadcast %11 : vector<32x1xf32> to vector<32x256xf32>
    %13 = arith.subf %7, %12 : vector<32x256xf32>
    %14 = arith.mulf %13, %13 : vector<32x256xf32>
    %cst_9 = arith.constant dense<0.000000e+00> : vector<32xf32>
    %15 = vector.multi_reduction <add>, %14, %cst_9 [1] : vector<32x256xf32> to vector<32xf32>
    %16 = vector.shape_cast %15 : vector<32xf32> to vector<32x1xf32>
    %cst_10 = arith.constant 2.560000e+02 : f32
    %17 = vector.broadcast %cst_10 : f32 to vector<32x1xf32>
    %18 = arith.divf %16, %17 : vector<32x1xf32>
    %cst_11 = arith.constant 9.99999974E-6 : f32
    %19 = vector.broadcast %cst_11 : f32 to vector<32x1xf32>
    %20 = arith.addf %18, %19 : vector<32x1xf32>
    %21 = math.rsqrt %20 : vector<32x1xf32>
    %22 = vector.broadcast %21 : vector<32x1xf32> to vector<32x256xf32>
    %23 = arith.mulf %13, %22 : vector<32x256xf32>
    %c0_12 = arith.constant 0 : index
    %c0_13 = arith.constant 0 : index
    %24 = vector.load %arg5[%c0_12, %c0_13] : memref<1x256xf32, #tpu.memory_space<vmem>>, vector<1x256xf32>
    %25 = vector.broadcast %24 : vector<1x256xf32> to vector<32x256xf32>
    %26 = arith.mulf %23, %25 : vector<32x256xf32>
    %c0_14 = arith.constant 0 : index
    %c0_15 = arith.constant 0 : index
    %27 = vector.load %arg6[%c0_14, %c0_15] : memref<1x256xf32, #tpu.memory_space<vmem>>, vector<1x256xf32>
    %28 = vector.broadcast %27 : vector<1x256xf32> to vector<32x256xf32>
    %29 = arith.addf %26, %28 : vector<32x256xf32>
    %c0_16 = arith.constant 0 : index
    %c0_17 = arith.constant 0 : index
    %30 = vector.load %arg7[%c0_16, %c0_17] : memref<32x256xf32, #tpu.memory_space<vmem>>, vector<32x256xf32>
    tpu.vector_store %arg7[%c0_16, %c0_17], %29 {strides = array<i32>} : memref<32x256xf32, #tpu.memory_space<vmem>>, vector<32x256xf32>,
    return
  }
  func.func @transform_0(%arg0: i32) -> (i32, i32) {
    %c0_i32 = arith.constant 0 : i32
    %c0_i32_0 = arith.constant 0 : i32
    return %arg0, %c0_i32 : i32, i32
  }
  func.func @transform_1(%arg0: i32) -> (i32, i32) {
    %c0_i32 = arith.constant 0 : i32
    %c0_i32_0 = arith.constant 0 : i32
    return %arg0, %c0_i32 : i32, i32
  }
  func.func @transform_2(%arg0: i32) -> (i32, i32) {
    %c0_i32 = arith.constant 0 : i32
    %c0_i32_0 = arith.constant 0 : i32
    %c0_i32_1 = arith.constant 0 : i32
    return %c0_i32, %c0_i32_0 : i32, i32
  }
  func.func @transform_3(%arg0: i32) -> (i32, i32) {
    %c0_i32 = arith.constant 0 : i32
    %c0_i32_0 = arith.constant 0 : i32
    %c0_i32_1 = arith.constant 0 : i32
    return %c0_i32, %c0_i32_0 : i32, i32
  }
  func.func @transform_4(%arg0: i32) -> (i32, i32) {
    %c0_i32 = arith.constant 0 : i32
    %c0_i32_0 = arith.constant 0 : i32
    %c0_i32_1 = arith.constant 0 : i32
    return %c0_i32, %c0_i32_0 : i32, i32
  }
  func.func @transform_5(%arg0: i32) -> (i32, i32) {
    %c0_i32 = arith.constant 0 : i32
    %c0_i32_0 = arith.constant 0 : i32
    %c0_i32_1 = arith.constant 0 : i32
    return %c0_i32, %c0_i32_0 : i32, i32
  }
  func.func @transform_6(%arg0: i32) -> (i32, i32) {
    %c0_i32 = arith.constant 0 : i32
    %c0_i32_0 = arith.constant 0 : i32
    return %arg0, %c0_i32 : i32, i32
  }
}

</mosaic_0001>

<llo_original>
// kernel: tpu_custom_call.1
$region0: #{tpu_custom_call.1}
  #allocation0 [shape = 'u32[]', space=smem, size = 0x4, offset = 0x4, fixed_abs, tag = 'smem constant byte address 0x4 - core index']
  #allocation1 [shape = 'u32[144,128]{1,0:T(1,128)}', space=vmem, size = 0x12000, scoped, tag = 'internal scratch']
  %s0 = inlined_call_operand.hbm [shape: f32[32,256], index: 0, kind: input, shape index: {}]
  %s1 = inlined_call_operand.hbm [shape: f32[32,256], index: 1, kind: input, shape index: {}]
  %s2 = inlined_call_operand.hbm [shape: f32[256,256], index: 2, kind: input, shape index: {}]
  %s3 = inlined_call_operand.vmem [shape: f32[1,256], index: 3, kind: input, shape index: {}]
  %s4 = inlined_call_operand.vmem [shape: f32[1,256], index: 4, kind: input, shape index: {}]
  %s5 = inlined_call_operand.vmem [shape: f32[1,256], index: 5, kind: input, shape index: {}]
  %s6 = inlined_call_operand.hbm [shape: f32[32,256], index: 6, kind: output, shape index: {}]
  %s7 = sld [smem:[#allocation0]]
  $region46: #{tpu_custom_call.1} parent=0
    _
  %s9 = ssub.s32 1, %s7
  %s10 = scalar_select 0, %s9, %s7
  $region1: #{tpu_custom_call.1} parent=0
    #allocation2 [shape = 'u8[32768]{0}', space=vmem, size = 0x8000, scoped, tag = 'input window, operand 0, single buffered']
    #allocation3 [shape = 's32[1]{0}', space=sflag, size = 0x4, scoped, tag = 'scoped memory for tpu_custom_call.1']
    #allocation4 [shape = 's32[1]{0}', space=sflag, size = 0x4, scoped, tag = 'scoped memory for tpu_custom_call.1']
    #allocation5 [shape = 'u8[32768]{0}', space=vmem, size = 0x8000, scoped, tag = 'input window, operand 1, single buffered']
    #allocation6 [shape = 's32[1]{0}', space=sflag, size = 0x4, scoped, tag = 'scoped memory for tpu_custom_call.1']
    #allocation7 [shape = 'u8[262144]{0}', space=vmem, size = 0x40000, scoped, tag = 'input window, operand 2, single buffered']
    #allocation8 [shape = 'u8[32768]{0}', space=vmem, size = 0x8000, scoped, tag = 'output window, operand 0, single buffered']
    %11 = vsyncpa [#allocation3], 0
    %12 = vsyncpa [#allocation6], 0
    %13 = vsyncpa [#allocation4], 0
    // Predicated region
    $region2: #{tpu_custom_call.1} parent=1 // pred_check
      _
    $region3: #{tpu_custom_call.1} parent=1 // pred_check_branch
      %15 = sbr.rel (0) target = $region5
    $region4: #{tpu_custom_call.1} parent=1 // pred_region
      %s17 = ssub.s32 1024, 1024
      %18 = vsyncadd [#allocation3], %s17
      %s19 = sshll.u32 [#allocation2], 4
      %s20 = int_to_ptr.vmem [resolvable:$true] %s19
      %25 = dma.hbm_to_vmem [thread:$0]  %s0, 1024, %s20, [#allocation3], 256, 256, 16
    $region5: #{tpu_custom_call.1} parent=1 // pred_fallthru
      _
    // Predicated region
    $region6: #{tpu_custom_call.1} parent=1 // pred_check
      _
    $region7: #{tpu_custom_call.1} parent=1 // pred_check_branch
      %27 = sbr.rel (0) target = $region9
    $region8: #{tpu_custom_call.1} parent=1 // pred_region
      %s29 = ssub.s32 1024, 1024
      %30 = vsyncadd [#allocation6], %s29
      %s31 = sshll.u32 [#allocation5], 4
      %s32 = int_to_ptr.vmem [resolvable:$true] %s31
      %37 = dma.hbm_to_vmem [thread:$0]  %s1, 1024, %s32, [#allocation6], 256, 256, 16
    $region9: #{tpu_custom_call.1} parent=1 // pred_fallthru
      _
    // Predicated region
    $region10: #{tpu_custom_call.1} parent=1 // pred_check
      _
    $region11: #{tpu_custom_call.1} parent=1 // pred_check_branch
      %39 = sbr.rel (0) target = $region13
    $region12: #{tpu_custom_call.1} parent=1 // pred_region
      %s41 = ssub.s32 8192, 8192
      %42 = vsyncadd [#allocation6], %s41
      %s43 = sshll.u32 [#allocation7], 4
      %s44 = int_to_ptr.vmem [resolvable:$true] %s43
      %49 = dma.hbm_to_vmem [thread:$0]  %s2, 8192, %s44, [#allocation6], 256, 256, 16
    $region13: #{tpu_custom_call.1} parent=1 // pred_fallthru
      _
    // Predicated region
    $region14: #{tpu_custom_call.1} parent=1 // pred_check
      _
    $region15: #{tpu_custom_call.1} parent=1 // pred_check_branch
      %51 = sbr.rel (0) target = $region17
    $region16: #{tpu_custom_call.1} parent=1 // pred_region
      _
    $region17: #{tpu_custom_call.1} parent=1 // pred_fallthru
      _
    // Predicated region
    $region18: #{tpu_custom_call.1} parent=1 // pred_check
      _
    $region19: #{tpu_custom_call.1} parent=1 // pred_check_branch
      %53 = sbr.rel (0) target = $region21
    $region20: #{tpu_custom_call.1} parent=1 // pred_region
      _
    $region21: #{tpu_custom_call.1} parent=1 // pred_fallthru
      _
    // Predicated region
    $region22: #{tpu_custom_call.1} parent=1 // pred_check
      _
    $region23: #{tpu_custom_call.1} parent=1 // pred_check_branch
      %55 = sbr.rel (0) target = $region25
    $region24: #{tpu_custom_call.1} parent=1 // pred_region
      _
    $region25: #{tpu_custom_call.1} parent=1 // pred_fallthru
      _
    // Predicated region
    $region26: #{tpu_custom_call.1} parent=1 // pred_check
      _
    $region27: #{tpu_custom_call.1} parent=1 // pred_check_branch
      %57 = sbr.rel (0) target = $region29
    $region28: #{tpu_custom_call.1} parent=1 // pred_region
      %58 = dma.done [#allocation3], 1024
    $region29: #{tpu_custom_call.1} parent=1 // pred_fallthru
      _
    // Predicated region
    $region30: #{tpu_custom_call.1} parent=1 // pred_check
      _
    $region31: #{tpu_custom_call.1} parent=1 // pred_check_branch
      %60 = sbr.rel (0) target = $region33
    $region32: #{tpu_custom_call.1} parent=1 // pred_region
      %61 = dma.done [#allocation6], 1024
    $region33: #{tpu_custom_call.1} parent=1 // pred_fallthru
      _
    // Predicated region
    $region34: #{tpu_custom_call.1} parent=1 // pred_check
      _
    $region35: #{tpu_custom_call.1} parent=1 // pred_check_branch
      %63 = sbr.rel (0) target = $region37
    $region36: #{tpu_custom_call.1} parent=1 // pred_region
      %64 = dma.done [#allocation6], 8192
    $region37: #{tpu_custom_call.1} parent=1 // pred_fallthru
      _
    %v65 = vld [vmem:[#allocation2] sm:$0xff]
    %v66 = vld [vmem:[#allocation2 + $0x8] sm:$0xff]
    %v67 = vld [vmem:[#allocation2 + $0x10] sm:$0xff]
    %v68 = vld [vmem:[#allocation2 + $0x18] sm:$0xff]
    %v69 = vld [vmem:[#allocation2 + $0x20] sm:$0xff]
    %v70 = vld [vmem:[#allocation2 + $0x28] sm:$0xff]
    %v71 = vld [vmem:[#allocation2 + $0x30] sm:$0xff]
    %v72 = vld [vmem:[#allocation2 + $0x38] sm:$0xff]
    %v73 = vld [vmem:[#allocation7] sm:$0xff]
    %v74 = vld [vmem:[#allocation7 + $0x8] sm:$0xff]
    %v75 = vld [vmem:[#allocation7 + $0x10] sm:$0xff]
    %v76 = vld [vmem:[#allocation7 + $0x18] sm:$0xff]
    %v77 = vld [vmem:[#allocation7 + $0x20] sm:$0xff]
    %v78 = vld [vmem:[#allocation7 + $0x28] sm:$0xff]
    %v79 = vld [vmem:[#allocation7 + $0x30] sm:$0xff]
    %v80 = vld [vmem:[#allocation7 + $0x38] sm:$0xff]
    %v81 = vld [vmem:[#allocation7 + $0x40] sm:$0xff]
    %v82 = vld [vmem:[#allocation7 + $0x48] sm:$0xff]
    %v83 = vld [vmem:[#allocation7 + $0x50] sm:$0xff]
    %v84 = vld [vmem:[#allocation7 + $0x58] sm:$0xff]
    %v85 = vld [vmem:[#allocation7 + $0x60] sm:$0xff]
    %v86 = vld [vmem:[#allocation7 + $0x68] sm:$0xff]
    %v87 = vld [vmem:[#allocation7 + $0x70] sm:$0xff]
    %v88 = vld [vmem:[#allocation7 + $0x78] sm:$0xff]
    %v89 = vld [vmem:[#allocation7 + $0x80] sm:$0xff]
    %v90 = vld [vmem:[#allocation7 + $0x88] sm:$0xff]
    %v91 = vld [vmem:[#allocation7 + $0x90] sm:$0xff]
    %v92 = vld [vmem:[#allocation7 + $0x98] sm:$0xff]
    %v93 = vld [vmem:[#allocation7 + $0xa0] sm:$0xff]
    %v94 = vld [vmem:[#allocation7 + $0xa8] sm:$0xff]
    %v95 = vld [vmem:[#allocation7 + $0xb0] sm:$0xff]
    %v96 = vld [vmem:[#allocation7 + $0xb8] sm:$0xff]
    %v97 = vld [vmem:[#allocation7 + $0xc0] sm:$0xff]
    %v98 = vld [vmem:[#allocation7 + $0xc8] sm:$0xff]
    %v99 = vld [vmem:[#allocation7 + $0xd0] sm:$0xff]
    %v100 = vld [vmem:[#allocation7 + $0xd8] sm:$0xff]
    %v101 = vld [vmem:[#allocation7 + $0xe0] sm:$0xff]
    %v102 = vld [vmem:[#allocation7 + $0xe8] sm:$0xff]
    %v103 = vld [vmem:[#allocation7 + $0xf0] sm:$0xff]
    %v104 = vld [vmem:[#allocation7 + $0xf8] sm:$0xff]
    %v105 = vld [vmem:[#allocation7 + $0x100] sm:$0xff]
    %v106 = vld [vmem:[#allocation7 + $0x108] sm:$0xff]
    %v107 = vld [vmem:[#allocation7 + $0x110] sm:$0xff]
    %v108 = vld [vmem:[#allocation7 + $0x118] sm:$0xff]
    %v109 = vld [vmem:[#allocation7 + $0x120] sm:$0xff]
    %v110 = vld [vmem:[#allocation7 + $0x128] sm:$0xff]
    %v111 = vld [vmem:[#allocation7 + $0x130] sm:$0xff]
    %v112 = vld [vmem:[#allocation7 + $0x138] sm:$0xff]
    %v113 = vld [vmem:[#allocation7 + $0x140] sm:$0xff]
    %v114 = vld [vmem:[#allocation7 + $0x148] sm:$0xff]
    %v115 = vld [vmem:[#allocation7 + $0x150] sm:$0xff]
    %v116 = vld [vmem:[#allocation7 + $0x158] sm:$0xff]
    %v117 = vld [vmem:[#allocation7 + $0x160] sm:$0xff]
    %v118 = vld [vmem:[#allocation7 + $0x168] sm:$0xff]
    %v119 = vld [vmem:[#allocation7 + $0x170] sm:$0xff]
    %v120 = vld [vmem:[#allocation7 + $0x178] sm:$0xff]
    %v121 = vld [vmem:[#allocation7 + $0x180] sm:$0xff]
    %v122 = vld [vmem:[#allocation7 + $0x188] sm:$0xff]
    %v123 = vld [vmem:[#allocation7 + $0x190] sm:$0xff]
    %v124 = vld [vmem:[#allocation7 + $0x198] sm:$0xff]
    %v125 = vld [vmem:[#allocation7 + $0x1a0] sm:$0xff]
    %v126 = vld [vmem:[#allocation7 + $0x1a8] sm:$0xff]
    %v127 = vld [vmem:[#allocation7 + $0x1b0] sm:$0xff]
    %v128 = vld [vmem:[#allocation7 + $0x1b8] sm:$0xff]
    %v129 = vld [vmem:[#allocation7 + $0x1c0] sm:$0xff]
    %v130 = vld [vmem:[#allocation7 + $0x1c8] sm:$0xff]
    %v131 = vld [vmem:[#allocation7 + $0x1d0] sm:$0xff]
    %v132 = vld [vmem:[#allocation7 + $0x1d8] sm:$0xff]
    %v133 = vld [vmem:[#allocation7 + $0x1e0] sm:$0xff]
    %v134 = vld [vmem:[#allocation7 + $0x1e8] sm:$0xff]
    %v135 = vld [vmem:[#allocation7 + $0x1f0] sm:$0xff]
    %v136 = vld [vmem:[#allocation7 + $0x1f8] sm:$0xff]
    %v137 = vld [vmem:[%s3] sm:$0x3]
    %v139 = vlaneseq
    %v140 = vshrl.u32 %v139, 7
    %v141 = vsub.s32 0, %v140
    %v142 = vrot.slane %v137, %v141
    %v143 = vlaneseq
    %v144 = vshrl.u32 %v143, 7
    %v145 = vsub.s32 1, %v144
    %v146 = vrot.slane %v137, %v145
    %149 = vmatprep.subr.mxu0 %v104
    %150 = vmatpush1.msra.mxu0 %v103
    %151 = vmatprep.subr.mxu0 %v102
    %152 = vmatpush1.msra.mxu0 %v101
    %153 = vmatprep.subr.mxu0 %v100
    %154 = vmatpush1.msra.mxu0 %v99
    %155 = vmatprep.subr.mxu0 %v98
    %156 = vmatpush1.msra.mxu0 %v97
    %157 = vmatprep.subr.mxu0 %v96
    %158 = vmatpush1.msra.mxu0 %v95
    %159 = vmatprep.subr.mxu0 %v94
    %160 = vmatpush1.msra.mxu0 %v93
    %161 = vmatprep.subr.mxu0 %v92
    %162 = vmatpush1.msra.mxu0 %v91
    %163 = vmatprep.subr.mxu0 %v90
    %164 = vmatpush1.msra.mxu0 %v89
    %165 = vmatprep.subr.mxu0 %v88
    %166 = vmatpush1.msra.mxu0 %v87
    %167 = vmatprep.subr.mxu0 %v86
    %168 = vmatpush1.msra.mxu0 %v85
    %169 = vmatprep.subr.mxu0 %v84
    %170 = vmatpush1.msra.mxu0 %v83
    %171 = vmatprep.subr.mxu0 %v82
    %172 = vmatpush1.msra.mxu0 %v81
    %173 = vmatprep.subr.mxu0 %v80
    %174 = vmatpush1.msra.mxu0 %v79
    %175 = vmatprep.subr.mxu0 %v78
    %176 = vmatpush1.msra.mxu0 %v77
    %177 = vmatprep.subr.mxu0 %v76
    %178 = vmatpush1.msra.mxu0 %v75
    %179 = vmatprep.subr.mxu0 %v74
    %180 = vmatpush1.msra.mxu0 %v73
    %181 = vmatprep.subr.mxu0 %v136
    %182 = vmatpush2.msra.mxu0 %v135
    %183 = vmatprep.subr.mxu0 %v134
    %184 = vmatpush2.msra.mxu0 %v133
    %185 = vmatprep.subr.mxu0 %v132
    %186 = vmatpush2.msra.mxu0 %v131
    %187 = vmatprep.subr.mxu0 %v130
    %188 = vmatpush2.msra.mxu0 %v129
    %189 = vmatprep.subr.mxu0 %v128
    %190 = vmatpush2.msra.mxu0 %v127
    %191 = vmatprep.subr.mxu0 %v126
    %192 = vmatpush2.msra.mxu0 %v125
    %193 = vmatprep.subr.mxu0 %v124
    %194 = vmatpush2.msra.mxu0 %v123
    %195 = vmatprep.subr.mxu0 %v122
    %196 = vmatpush2.msra.mxu0 %v121
    %197 = vmatprep.subr.mxu0 %v120
    %198 = vmatpush2.msra.mxu0 %v119
    %199 = vmatprep.subr.mxu0 %v118
    %200 = vmatpush2.msra.mxu0 %v117
    %201 = vmatprep.subr.mxu0 %v116
    %202 = vmatpush2.msra.mxu0 %v115
    %203 = vmatprep.subr.mxu0 %v114
    %204 = vmatpush2.msra.mxu0 %v113
    %205 = vmatprep.subr.mxu0 %v112
    %206 = vmatpush2.msra.mxu0 %v111
    %207 = vmatprep.subr.mxu0 %v110
    %208 = vmatpush2.msra.mxu0 %v109
    %209 = vmatprep.subr.mxu0 %v108
    %210 = vmatpush2.msra.mxu0 %v107
    %211 = vmatprep.subr.mxu0 %v106
    %212 = vmatpush2.msra.mxu0 %v105
    %213 = vmatprep.mubr.f32.mxu0 %v66
    %214 = vmatmul.mubr.f32.gmra.mxu0 %v65
    %v215 = vpop.f32.mrf.mxu0
    %v216 = vadd.f32 %v142, %v215
    %v217 = vpop.f32.mrf.mxu0
    %v218 = vadd.f32 %v146, %v217
    %219 = vmatprep.mubr.f32.mxu0 %v68
    %220 = vmatmul.mubr.f32.gmra.mxu0 %v67
    %v221 = vpop.f32.mrf.mxu0
    %v222 = vadd.f32 %v142, %v221
    %v223 = vpop.f32.mrf.mxu0
    %v224 = vadd.f32 %v146, %v223
    %225 = vmatprep.mubr.f32.mxu0 %v70
    %226 = vmatmul.mubr.f32.gmra.mxu0 %v69
    %v227 = vpop.f32.mrf.mxu0
    %v228 = vadd.f32 %v142, %v227
    %v229 = vpop.f32.mrf.mxu0
    %v230 = vadd.f32 %v146, %v229
    %231 = vmatprep.mubr.f32.mxu0 %v72
    %232 = vmatmul.mubr.f32.gmra.mxu0 %v71
    %v233 = vpop.f32.mrf.mxu0
    %v234 = vadd.f32 %v142, %v233
    %v235 = vpop.f32.mrf.mxu0
    %v236 = vadd.f32 %v146, %v235
    %237 = vdwg.mxu0
    %v238 = vld [vmem:[#allocation5] sm:$0xff]
    %v239 = vld [vmem:[#allocation5 + $0x8] sm:$0xff]
    %v240 = vld [vmem:[#allocation5 + $0x10] sm:$0xff]
    %v241 = vld [vmem:[#allocation5 + $0x18] sm:$0xff]
    %v242 = vld [vmem:[#allocation5 + $0x20] sm:$0xff]
    %v243 = vld [vmem:[#allocation5 + $0x28] sm:$0xff]
    %v244 = vld [vmem:[#allocation5 + $0x30] sm:$0xff]
    %v245 = vld [vmem:[#allocation5 + $0x38] sm:$0xff]
    %v246 = vadd.f32 %v216, %v238
    %v247 = vadd.f32 %v218, %v239
    %v248 = vadd.f32 %v222, %v240
    %v249 = vadd.f32 %v224, %v241
    %v250 = vadd.f32 %v228, %v242
    %v251 = vadd.f32 %v230, %v243
    %v252 = vadd.f32 %v234, %v244
    %v253 = vadd.f32 %v236, %v245
    %v254 = vadd.f32 %v246, %v247
    %255 = vadd.xlane.f32.xlu0 %v254
    %v256 = vpop.xlane.xlu0 %255
    %v257 = vadd.f32 %v248, %v249
    %258 = vadd.xlane.f32.xlu0 %v257
    %v259 = vpop.xlane.xlu0 %258
    %v260 = vadd.f32 %v250, %v251
    %261 = vadd.xlane.f32.xlu0 %v260
    %v262 = vpop.xlane.xlu0 %261
    %v263 = vadd.f32 %v252, %v253
    %264 = vadd.xlane.f32.xlu0 %v263
    %v265 = vpop.xlane.xlu0 %264
    %v266 = vrcp.pop 256.0
    %v267 = vmul.f32 %v256, %v266
    %v268 = vmul.f32 %v259, %v266
    %v269 = vmul.f32 %v262, %v266
    %v270 = vmul.f32 %v265, %v266
    %v271 = vsub.f32 %v246, %v267
    %v272 = vsub.f32 %v247, %v267
    %v273 = vsub.f32 %v248, %v268
    %v274 = vsub.f32 %v249, %v268
    %v275 = vsub.f32 %v250, %v269
    %v276 = vsub.f32 %v251, %v269
    %v277 = vsub.f32 %v252, %v270
    %v278 = vsub.f32 %v253, %v270
    %v279 = vmul.f32 %v271, %v271
    %v280 = vmul.f32 %v272, %v272
    %v281 = vmul.f32 %v273, %v273
    %v282 = vmul.f32 %v274, %v274
    %v283 = vmul.f32 %v275, %v275
    %v284 = vmul.f32 %v276, %v276
    %v285 = vmul.f32 %v277, %v277
    %v286 = vmul.f32 %v278, %v278
    %v287 = vadd.f32 %v279, %v280
    %288 = vadd.xlane.f32.xlu0 %v287
    %v289 = vpop.xlane.xlu0 %288
    %v290 = vadd.f32 %v281, %v282
    %291 = vadd.xlane.f32.xlu0 %v290
    %v292 = vpop.xlane.xlu0 %291
    %v293 = vadd.f32 %v283, %v284
    %294 = vadd.xlane.f32.xlu0 %v293
    %v295 = vpop.xlane.xlu0 %294
    %v296 = vadd.f32 %v285, %v286
    %297 = vadd.xlane.f32.xlu0 %v296
    %v298 = vpop.xlane.xlu0 %297
    %v299 = vmul.f32 %v289, %v266
    %v300 = vmul.f32 %v292, %v266
    %v301 = vmul.f32 %v295, %v266
    %v302 = vmul.f32 %v298, %v266
    %v303 = vadd.f32 %v299, 1e-05
    %v304 = vadd.f32 %v300, 1e-05
    %v305 = vadd.f32 %v301, 1e-05
    %v306 = vadd.f32 %v302, 1e-05
    %v307 = vrsqrt.pop %v303
    %v308 = vrsqrt.pop %v304
    %v309 = vrsqrt.pop %v305
    %v310 = vrsqrt.pop %v306
    %v311 = vmul.f32 %v271, %v307
    %v312 = vmul.f32 %v272, %v307
    %v313 = vmul.f32 %v273, %v308
    %v314 = vmul.f32 %v274, %v308
    %v315 = vmul.f32 %v275, %v309
    %v316 = vmul.f32 %v276, %v309
    %v317 = vmul.f32 %v277, %v310
    %v318 = vmul.f32 %v278, %v310
    %v319 = vld [vmem:[%s4] sm:$0x3]
    %v321 = vlaneseq
    %v322 = vshrl.u32 %v321, 7
    %v323 = vsub.s32 0, %v322
    %v324 = vrot.slane %v319, %v323
    %v325 = vlaneseq
    %v326 = vshrl.u32 %v325, 7
    %v327 = vsub.s32 1, %v326
    %v328 = vrot.slane %v319, %v327
    %v331 = vmul.f32 %v311, %v324
    %v332 = vmul.f32 %v312, %v328
    %v333 = vmul.f32 %v313, %v324
    %v334 = vmul.f32 %v314, %v328
    %v335 = vmul.f32 %v315, %v324
    %v336 = vmul.f32 %v316, %v328
    %v337 = vmul.f32 %v317, %v324
    %v338 = vmul.f32 %v318, %v328
    %v339 = vld [vmem:[%s5] sm:$0x3]
    %v341 = vlaneseq
    %v342 = vshrl.u32 %v341, 7
    %v343 = vsub.s32 0, %v342
    %v344 = vrot.slane %v339, %v343
    %v345 = vlaneseq
    %v346 = vshrl.u32 %v345, 7
    %v347 = vsub.s32 1, %v346
    %v348 = vrot.slane %v339, %v347
    %v351 = vadd.f32 %v331, %v344
    %v352 = vadd.f32 %v332, %v348
    %v353 = vadd.f32 %v333, %v344
    %v354 = vadd.f32 %v334, %v348
    %v355 = vadd.f32 %v335, %v344
    %v356 = vadd.f32 %v336, %v348
    %v357 = vadd.f32 %v337, %v344
    %v358 = vadd.f32 %v338, %v348
    %359 = vst [vmem:[#allocation8] sm:$0xff] %v351
    %360 = vst [vmem:[#allocation8 + $0x8] sm:$0xff] %v352
    %361 = vst [vmem:[#allocation8 + $0x10] sm:$0xff] %v353
    %362 = vst [vmem:[#allocation8 + $0x18] sm:$0xff] %v354
    %363 = vst [vmem:[#allocation8 + $0x20] sm:$0xff] %v355
    %364 = vst [vmem:[#allocation8 + $0x28] sm:$0xff] %v356
    %365 = vst [vmem:[#allocation8 + $0x30] sm:$0xff] %v357
    %366 = vst [vmem:[#allocation8 + $0x38] sm:$0xff] %v358
    // Predicated region
    $region38: #{tpu_custom_call.1} parent=1 // pred_check
      _
    $region39: #{tpu_custom_call.1} parent=1 // pred_check_branch
      %368 = sbr.rel (0) target = $region41
    $region40: #{tpu_custom_call.1} parent=1 // pred_region
      %s370 = ssub.s32 1024, 1024
      %371 = vsyncadd [#allocation4], %s370
      %s372 = sshll.u32 [#allocation8], 4
      %s373 = int_to_ptr.vmem [resolvable:$true] %s372
      %378 = dma.vmem_to_hbm [thread:$0]  %s373, 1024, %s6, [#allocation4], 256, 256, 16
    $region41: #{tpu_custom_call.1} parent=1 // pred_fallthru
      _
    // Predicated region
    $region42: #{tpu_custom_call.1} parent=1 // pred_check
      _
    $region43: #{tpu_custom_call.1} parent=1 // pred_check_branch
      %380 = sbr.rel (0) target = $region45
    $region44: #{tpu_custom_call.1} parent=1 // pred_region
      %381 = dma.done [#allocation4], 1024
    $region45: #{tpu_custom_call.1} parent=1 // pred_fallthru
      _
    %382 = vsyncpa [#allocation3], 1
    %383 = vsyncpa [#allocation6], 1
    %384 = vsyncpa [#allocation4], 1

</llo_original>
